<compile_context>
chip_gen: v7x
topology: tpu7x:2x2x1
jax: 0.10.0
libtpu: 0.0.40
codegen_flags: <defaults>
</compile_context>

<pallas_src>
import functools

import numpy as np
import jax
import jax.numpy as jnp
from jax.experimental import pallas as pl
from jax.experimental.pallas import tpu as pltpu


def _centralized_loss_kernel(k_ref, w_ref, o_ref, *, center):
    # k_ref: (1, K*K) lane-dense row-major flatten of the learned kernel.
    # w_ref: (2, K*K) precomputed index weights (row index, col index).
    k = k_ref[...].astype(jnp.float32)   # keep explicit f32 upcast (v5e bf16 path)
    row_w = w_ref[0:1, :]                 # static slice: (1, K*K) row-index weights
    col_w = w_ref[1:2, :]                 # static slice: (1, K*K) col-index weights

    total = jnp.sum(k)
    inv_total = 1.0 / total               # exact divide on purpose (numerical fidelity)

    # (kernel.sum(dim=1) @ idx) == sum over all (i,j) of k[i,j]*i ; same for cols.
    com_r = jnp.sum(k * row_w) * inv_total
    com_c = jnp.sum(k * col_w) * inv_total

    # nn.MSELoss over the 2-element stacked center-of-mass vs [center, center].
    o_ref[0] = 0.5 * ((com_r - center) ** 2 + (com_c - center) ** 2)


def centralized_loss(kernel, scale_factor=0.5):
    k_size = kernel.shape[0]
    assert kernel.shape == (k_size, k_size), "expects a square (K, K) kernel"
    n = k_size * k_size

    # Fully static: baked into the kernel as a Python float (no SMEM operand).
    wanted_center = float(k_size // 2 + 0.5 * (int(1.0 / scale_factor) - k_size % 2))

    # Lane-dense view of the kernel: row-major (1, K*K). Free layout plumbing
    # (contiguous reshape) done outside the kernel body.
    k_flat = kernel.reshape(1, n)

    # Precomputed index-weight rows (host constants):
    #   weights[0, i*K + j] = i  (row index),  weights[1, i*K + j] = j (col index)
    ii, jj = np.meshgrid(np.arange(k_size), np.arange(k_size), indexing="ij")
    weights = jnp.asarray(
        np.stack([ii.reshape(-1), jj.reshape(-1)]).astype(np.float32)
    )  # (2, K*K)

    body = functools.partial(_centralized_loss_kernel, center=wanted_center)

    out = pl.pallas_call(
        body,
        out_shape=jax.ShapeDtypeStruct((1,), jnp.float32),
        in_specs=[
            pl.BlockSpec((1, n), lambda: (0, 0)),   # full lane-dense kernel slab
            pl.BlockSpec((2, n), lambda: (0, 0)),   # index-weight rows
        ],
        out_specs=pl.BlockSpec(memory_space=pltpu.SMEM),  # scalar loss
        # Advisory hint: this custom call is tiny; let XLA overlap it.
        cost_estimate=pl.CostEstimate(
            flops=5 * n,              # 2 muls + 3 reduces over K*K elems (approx)
            transcendentals=0,
            bytes_accessed=4 * n + 4 * 2 * n + 4,
        ),
    )(k_flat, weights)
    return out[0]


def _reference_loss(kernel, scale_factor=0.5):
    k_size = kernel.shape[0]
    idx = jnp.arange(k_size, dtype=jnp.float32)
    wanted = k_size // 2 + 0.5 * (int(1.0 / scale_factor) - k_size % 2)
    total = jnp.sum(kernel)
    com_r = jnp.dot(jnp.sum(kernel, axis=1), idx) / total
    com_c = jnp.dot(jnp.sum(kernel, axis=0), idx) / total
    return 0.5 * ((com_r - wanted) ** 2 + (com_c - wanted) ** 2)


if __name__ == "__main__":
    k_size = 16  # deterministic synthetic "learned" kernel from KernelGAN
    key = jax.random.PRNGKey(0)
    kernel = jax.random.uniform(key, (k_size, k_size), dtype=jnp.float32)

    loss = centralized_loss(kernel, scale_factor=0.5)
    loss = jax.block_until_ready(loss)

    ref = _reference_loss(kernel, scale_factor=0.5)
    # Flat weighted reduces use a slightly different f32 summation order than
    # the two-stage reference, so allow a few ulps of slack.
    assert jnp.allclose(loss, ref, rtol=1e-4, atol=1e-5), (loss, ref)

    print("KERNEL_OK")
</pallas_src>

<mosaic_0001>
module attributes {stable_mosaic.version = 11 : i64} {
  func.func @_centralized_loss_kernel(%arg0: memref<1x256xf32, #tpu.memory_space<vmem>>, %arg1: memref<2x256xf32, #tpu.memory_space<vmem>>, %arg2: memref<1xf32, #tpu.memory_space<smem>>) attributes {dimension_semantics = [], scalar_prefetch = 0 : i64, scratch_operands = 0 : i64, tpu.core_type = #tpu.core_type<tc>} {
    %c0 = arith.constant 0 : index
    %c0_0 = arith.constant 0 : index
    %0 = vector.load %arg0[%c0, %c0_0] : memref<1x256xf32, #tpu.memory_space<vmem>>, vector<1x256xf32>
    %c0_1 = arith.constant 0 : index
    %c0_2 = arith.constant 0 : index
    %1 = vector.load %arg1[%c0_1, %c0_2] : memref<2x256xf32, #tpu.memory_space<vmem>>, vector<1x256xf32>
    %c1 = arith.constant 1 : index
    %c0_3 = arith.constant 0 : index
    %2 = vector.load %arg1[%c1, %c0_3] : memref<2x256xf32, #tpu.memory_space<vmem>>, vector<1x256xf32>
    %3 = vector.shape_cast %0 : vector<1x256xf32> to vector<1x1x256xf32>
    %cst = arith.constant dense<0.000000e+00> : vector<1xf32>
    %4 = vector.multi_reduction <add>, %3, %cst [1, 2] : vector<1x1x256xf32> to vector<1xf32>
    %5 = vector.shape_cast %4 : vector<1xf32> to vector<1x1x1xf32>
    %6 = vector.extract %5[0, 0, 0] : f32 from vector<1x1x1xf32>
    %cst_4 = arith.constant 1.000000e+00 : f32
    %7 = arith.divf %cst_4, %6 : f32
    %8 = arith.mulf %0, %1 : vector<1x256xf32>
    %9 = vector.shape_cast %8 : vector<1x256xf32> to vector<1x1x256xf32>
    %cst_5 = arith.constant dense<0.000000e+00> : vector<1xf32>
    %10 = vector.multi_reduction <add>, %9, %cst_5 [1, 2] : vector<1x1x256xf32> to vector<1xf32>
    %11 = vector.shape_cast %10 : vector<1xf32> to vector<1x1x1xf32>
    %12 = vector.extract %11[0, 0, 0] : f32 from vector<1x1x1xf32>
    %13 = arith.mulf %12, %7 : f32
    %14 = arith.mulf %0, %2 : vector<1x256xf32>
    %15 = vector.shape_cast %14 : vector<1x256xf32> to vector<1x1x256xf32>
    %cst_6 = arith.constant dense<0.000000e+00> : vector<1xf32>
    %16 = vector.multi_reduction <add>, %15, %cst_6 [1, 2] : vector<1x1x256xf32> to vector<1xf32>
    %17 = vector.shape_cast %16 : vector<1xf32> to vector<1x1x1xf32>
    %18 = vector.extract %17[0, 0, 0] : f32 from vector<1x1x1xf32>
    %19 = arith.mulf %18, %7 : f32
    %cst_7 = arith.constant 9.000000e+00 : f32
    %20 = arith.subf %13, %cst_7 : f32
    %21 = arith.mulf %20, %20 : f32
    %cst_8 = arith.constant 9.000000e+00 : f32
    %22 = arith.subf %19, %cst_8 : f32
    %23 = arith.mulf %22, %22 : f32
    %24 = arith.addf %21, %23 : f32
    %cst_9 = arith.constant 5.000000e-01 : f32
    %25 = arith.mulf %cst_9, %24 : f32
    %c0_10 = arith.constant 0 : index
    %26 = memref.load %arg2[%c0_10] : memref<1xf32, #tpu.memory_space<smem>>
    memref.store %25, %arg2[%c0_10] : memref<1xf32, #tpu.memory_space<smem>>
    return
  }
}

</mosaic_0001>

<llo_original>
// kernel: tpu_custom_call.1
$region0: #{tpu_custom_call.1}
  #allocation0 [shape = 'u32[]', space=smem, size = 0x4, offset = 0x4, fixed_abs, tag = 'smem constant byte address 0x4 - core index']
  #allocation1 [shape = 'u32[144,128]{1,0:T(1,128)}', space=vmem, size = 0x12000, scoped, tag = 'internal scratch']
  %s0 = inlined_call_operand.hbm [shape: f32[1,256], index: 0, kind: input, shape index: {}]
  %s1 = inlined_call_operand.hbm [shape: f32[2,256], index: 1, kind: input, shape index: {}]
  %s2 = inlined_call_operand.hbm [shape: f32[1], index: 2, kind: output, shape index: {}]
  %s3 = sld [smem:[#allocation0]]
  $region26: #{tpu_custom_call.1} parent=0
    _
  %s5 = ssub.s32 1, %s3
  %s6 = scalar_select 0, %s5, %s3
  $region1: #{tpu_custom_call.1} parent=0
    #allocation2 [shape = 'u8[1024]{0}', space=vmem, size = 0x400, scoped, tag = 'input window, operand 0, single buffered']
    #allocation3 [shape = 's32[1]{0}', space=sflag, size = 0x4, scoped, tag = 'scoped memory for tpu_custom_call.1']
    #allocation4 [shape = 's32[1]{0}', space=sflag, size = 0x4, scoped, tag = 'scoped memory for tpu_custom_call.1']
    #allocation5 [shape = 'u8[2048]{0}', space=vmem, size = 0x800, scoped, tag = 'input window, operand 1, single buffered']
    #allocation6 [shape = 's32[1]{0}', space=sflag, size = 0x4, scoped, tag = 'scoped memory for tpu_custom_call.1']
    #allocation7 [shape = 'u8[512]{0}', space=smem, size = 0x200, scoped, tag = 'output window, operand 0, single buffered']
    %7 = vsyncpa [#allocation3], 0
    %8 = vsyncpa [#allocation6], 0
    %9 = vsyncpa [#allocation4], 0
    // Predicated region
    $region2: #{tpu_custom_call.1} parent=1 // pred_check
      _
    $region3: #{tpu_custom_call.1} parent=1 // pred_check_branch
      %11 = sbr.rel (0) target = $region5
    $region4: #{tpu_custom_call.1} parent=1 // pred_region
      %s13 = ssub.s32 32, 32
      %14 = vsyncadd [#allocation3], %s13
      %s16 = sshll.u32 [#allocation2], 4
      %s17 = int_to_ptr.vmem [resolvable:$true] %s16
      %19 = dma.hbm_to_vmem [thread:$0]  %s0, 32, %s17, [#allocation3]
    $region5: #{tpu_custom_call.1} parent=1 // pred_fallthru
      _
    // Predicated region
    $region6: #{tpu_custom_call.1} parent=1 // pred_check
      _
    $region7: #{tpu_custom_call.1} parent=1 // pred_check_branch
      %21 = sbr.rel (0) target = $region9
    $region8: #{tpu_custom_call.1} parent=1 // pred_region
      %s23 = ssub.s32 64, 64
      %24 = vsyncadd [#allocation6], %s23
      %s26 = sshll.u32 [#allocation5], 4
      %s27 = int_to_ptr.vmem [resolvable:$true] %s26
      %29 = dma.hbm_to_vmem [thread:$0]  %s1, 64, %s27, [#allocation6]
    $region9: #{tpu_custom_call.1} parent=1 // pred_fallthru
      _
    // Predicated region
    $region10: #{tpu_custom_call.1} parent=1 // pred_check
      _
    $region11: #{tpu_custom_call.1} parent=1 // pred_check_branch
      %31 = sbr.rel (0) target = $region13
    $region12: #{tpu_custom_call.1} parent=1 // pred_region
      %32 = dma.done [#allocation3], 32
    $region13: #{tpu_custom_call.1} parent=1 // pred_fallthru
      _
    // Predicated region
    $region14: #{tpu_custom_call.1} parent=1 // pred_check
      _
    $region15: #{tpu_custom_call.1} parent=1 // pred_check_branch
      %34 = sbr.rel (0) target = $region17
    $region16: #{tpu_custom_call.1} parent=1 // pred_region
      %35 = dma.done [#allocation6], 64
    $region17: #{tpu_custom_call.1} parent=1 // pred_fallthru
      _
    %v36 = vld [vmem:[#allocation2] sm:$0x3]
    %v37 = vld [vmem:[#allocation5] ss:$2 sm:$0x3]
    %s38 = scalar_lea.vmem [#allocation5], 1
    %v39 = vld [vmem:[%s38] ss:$2 sm:$0x3]
    %v41 = vlaneseq
    %v42 = vshrl.u32 %v41, 7
    %v43 = vsub.s32 0, %v42
    %v44 = vrot.slane %v36, %v43
    %v45 = vlaneseq
    %v46 = vshrl.u32 %v45, 7
    %v47 = vsub.s32 1, %v46
    %v48 = vrot.slane %v36, %v47
    %vm51 = vcmask 1040384
    %v52 = vsel %vm51, %v44, 0.0
    %v53 = vsel %vm51, %v48, 0.0
    %v54 = vadd.f32 %v52, %v53
    %55 = vadd.xlane.f32.xlu0 %v54
    %v56 = vpop.xlane.xlu0 %55
    %v57 = vrot.slane %v56, 4
    %v58 = vadd.f32 %v56, %v57
    %v59 = vrot.slane %v58, 2
    %v60 = vadd.f32 %v58, %v59
    %v61 = vrot.slane %v60, 1
    %v62 = vadd.f32 %v60, %v61
    %s63 = vtos %v62
    %v64 = vstv %s63
    %v65 = vrcp.pop %v64
    %s66 = vtos %v65
    %v67 = vmul.f32 %v36, %v37
    %v69 = vlaneseq
    %v70 = vshrl.u32 %v69, 7
    %v71 = vsub.s32 0, %v70
    %v72 = vrot.slane %v67, %v71
    %v73 = vlaneseq
    %v74 = vshrl.u32 %v73, 7
    %v75 = vsub.s32 1, %v74
    %v76 = vrot.slane %v67, %v75
    %v79 = vsel %vm51, %v72, 0.0
    %v80 = vsel %vm51, %v76, 0.0
    %v81 = vadd.f32 %v79, %v80
    %82 = vadd.xlane.f32.xlu0 %v81
    %v83 = vpop.xlane.xlu0 %82
    %v84 = vrot.slane %v83, 4
    %v85 = vadd.f32 %v83, %v84
    %v86 = vrot.slane %v85, 2
    %v87 = vadd.f32 %v85, %v86
    %v88 = vrot.slane %v87, 1
    %v89 = vadd.f32 %v87, %v88
    %s90 = vtos %v89
    %s91 = smul.f32 %s90, %s66
    %v92 = vmul.f32 %v36, %v39
    %v94 = vlaneseq
    %v95 = vshrl.u32 %v94, 7
    %v96 = vsub.s32 0, %v95
    %v97 = vrot.slane %v92, %v96
    %v98 = vlaneseq
    %v99 = vshrl.u32 %v98, 7
    %v100 = vsub.s32 1, %v99
    %v101 = vrot.slane %v92, %v100
    %v104 = vsel %vm51, %v97, 0.0
    %v105 = vsel %vm51, %v101, 0.0
    %v106 = vadd.f32 %v104, %v105
    %107 = vadd.xlane.f32.xlu0 %v106
    %v108 = vpop.xlane.xlu0 %107
    %v109 = vrot.slane %v108, 4
    %v110 = vadd.f32 %v108, %v109
    %v111 = vrot.slane %v110, 2
    %v112 = vadd.f32 %v110, %v111
    %v113 = vrot.slane %v112, 1
    %v114 = vadd.f32 %v112, %v113
    %s115 = vtos %v114
    %s116 = smul.f32 %s115, %s66
    %s117 = ssub.f32 %s91, 9.0
    %s118 = smul.f32 %s117, %s117
    %s119 = ssub.f32 %s116, 9.0
    %s120 = smul.f32 %s119, %s119
    %s121 = sadd.f32 %s118, %s120
    %s122 = smul.f32 %s121, 0.5
    %s123 = scalar_lea.smem [#allocation7], 0
    %124 = sst [smem:[%s123]] %s122
    // Predicated region
    $region18: #{tpu_custom_call.1} parent=1 // pred_check
      _
    $region19: #{tpu_custom_call.1} parent=1 // pred_check_branch
      %126 = sbr.rel (0) target = $region21
    $region20: #{tpu_custom_call.1} parent=1 // pred_region
      %s128 = ssub.s32 16, 16
      %129 = vsyncadd [#allocation4], %s128
      %132 = dma.smem_to_hbm [#allocation7], 16, %s2, [#allocation4]
    $region21: #{tpu_custom_call.1} parent=1 // pred_fallthru
      _
    // Predicated region
    $region22: #{tpu_custom_call.1} parent=1 // pred_check
      _
    $region23: #{tpu_custom_call.1} parent=1 // pred_check_branch
      %134 = sbr.rel (0) target = $region25
    $region24: #{tpu_custom_call.1} parent=1 // pred_region
      %135 = dma.done [#allocation4], 16
    $region25: #{tpu_custom_call.1} parent=1 // pred_fallthru
      _
    %136 = sfence
    %137 = vsyncpa [#allocation3], 1
    %138 = vsyncpa [#allocation6], 1
    %139 = vsyncpa [#allocation4], 1

</llo_original>
